<compile_context>
chip_gen: v7x
topology: tpu7x:2x2x1
jax: 0.10.0
libtpu: 0.0.40
codegen_flags: <defaults>
</compile_context>

<pallas_src>
import jax
import jax.numpy as jnp
from jax.experimental import pallas as pl
from jax.experimental.pallas import tpu as pltpu


def mlp_kernel(x_ref, w1_ref, b1_ref, w2_ref, b2_ref,
               w3_ref, b3_ref, w4_ref, b4_ref, o_ref):
    # Fused 4-layer MLP on one row tile:
    #   (tm,20) -> (tm,64) -> (tm,128) -> (tm,64) -> (tm,128)   (last 2 lanes used)
    cdt = w1_ref.dtype  # matmul operand dtype (bf16); accumulation is f32.
    x = x_ref[...].astype(cdt)

    h = jnp.dot(x, w1_ref[...], preferred_element_type=jnp.float32) + b1_ref[...]
    h = jnp.maximum(h, 0.0)

    h = jnp.dot(h.astype(cdt), w2_ref[...],
                preferred_element_type=jnp.float32) + b2_ref[...]
    h = jnp.maximum(h, 0.0)

    h = jnp.dot(h.astype(cdt), w3_ref[...],
                preferred_element_type=jnp.float32) + b3_ref[...]
    h = jnp.maximum(h, 0.0)

    out = jnp.dot(h.astype(cdt), w4_ref[...],
                  preferred_element_type=jnp.float32) + b4_ref[...]
    # (tm, 128) lane-dense, unmasked store; only the first 2 lanes carry data.
    o_ref[...] = out.astype(o_ref.dtype)


def position_predictor(x, params, *, max_tm=512, compute_dtype=jnp.bfloat16):
    """Forward pass of PositionPredictor.

    x: any shape whose total size is divisible by 20 (mirrors x.view(-1, 20)).
    Returns (N, 2) float32 where N = x.size // 20.
    """
    x = x.reshape(-1, 20).astype(jnp.float32)
    n = x.shape[0]

    # Row tile: as large as possible (cap max_tm) to amortize per-step pipeline
    # overhead, but keep >= 2 grid steps when n allows so v7x's two TensorCores
    # both get work via dimension_semantics=("parallel",).
    half = -(-n // 2)                               # ceil(n / 2)
    tm = max(8, min(max_tm, ((half + 7) // 8) * 8))  # multiple of 8 sublanes
    n_pad = ((n + tm - 1) // tm) * tm
    if n_pad != n:
        x = jnp.pad(x, ((0, n_pad - n), (0, 0)))

    w1, b1, w2, b2, w3, b3, w4, b4 = params

    # Lane-dense output: pad the last layer from 2 -> 128 output lanes. The extra
    # HBM writeback (~512 B/row) is cheap for this model; slice [:, :2] afterwards.
    w4p = jnp.zeros((w4.shape[0], 128), w4.dtype).at[:, :2].set(w4)
    b4p = jnp.zeros((1, 128), b4.dtype).at[:, :2].set(b4)

    # bf16 matmul operands (MXU-native on v6e/v7x; also fine on v5e), f32 biases.
    ws = [w.astype(compute_dtype) for w in (w1, w2, w3, w4p)]
    bs = [b.astype(jnp.float32) for b in (b1, b2, b3, b4p)]

    grid = (n_pad // tm,)

    def resident(shape):
        # Grid-invariant operand: constant block index means its DMA is issued
        # once and the tile stays VMEM-resident across all grid steps.
        return pl.BlockSpec(shape, lambda i: (0, 0))

    out = pl.pallas_call(
        mlp_kernel,
        out_shape=jax.ShapeDtypeStruct((n_pad, 128), jnp.float32),
        grid_spec=pl.GridSpec(
            grid=grid,
            in_specs=[
                pl.BlockSpec((tm, 20), lambda i: (i, 0)),   # x row tile
                resident(ws[0].shape), resident(bs[0].shape),
                resident(ws[1].shape), resident(bs[1].shape),
                resident(ws[2].shape), resident(bs[2].shape),
                resident(ws[3].shape), resident(bs[3].shape),
            ],
            out_specs=pl.BlockSpec((tm, 128), lambda i: (i, 0)),
        ),
        compiler_params=pltpu.CompilerParams(
            dimension_semantics=("parallel",)),
    )(x, ws[0], bs[0], ws[1], bs[1], ws[2], bs[2], ws[3], bs[3])

    return out[:n, :2]


def init_params(key):
    """Deterministic init matching nn.Linear shapes (stored transposed)."""
    dims = [(20, 64), (64, 128), (128, 64), (64, 2)]
    params = []
    for (fan_in, fan_out) in dims:
        key, kw, kb = jax.random.split(key, 3)
        bound = 1.0 / jnp.sqrt(fan_in)
        # PyTorch nn.Linear weight is (out, in); we store (in, out) for x @ W.
        w = jax.random.uniform(kw, (fan_in, fan_out), jnp.float32, -bound, bound)
        b = jax.random.uniform(kb, (1, fan_out), jnp.float32, -bound, bound)
        params += [w, b]
    return tuple(params)


def reference_forward_f32(x, params):
    """Pure-f32 reference (exact mirror of the PyTorch module)."""
    x = x.reshape(-1, 20).astype(jnp.float32)
    w1, b1, w2, b2, w3, b3, w4, b4 = params
    h = jnp.maximum(x @ w1 + b1, 0.0)
    h = jnp.maximum(h @ w2 + b2, 0.0)
    h = jnp.maximum(h @ w3 + b3, 0.0)
    return h @ w4 + b4


def reference_forward_mixed(x, params, compute_dtype=jnp.bfloat16):
    """Reference using the same bf16-operand / f32-accumulate matmuls as the kernel."""
    x = x.reshape(-1, 20).astype(jnp.float32)
    w1, b1, w2, b2, w3, b3, w4, b4 = params

    def layer(h, w, b, relu):
        y = jnp.dot(h.astype(compute_dtype), w.astype(compute_dtype),
                    preferred_element_type=jnp.float32) + b.astype(jnp.float32)
        return jnp.maximum(y, 0.0) if relu else y

    h = layer(x, w1, b1, True)
    h = layer(h, w2, b2, True)
    h = layer(h, w3, b3, True)
    return layer(h, w4, b4, False)


if __name__ == "__main__":
    key = jax.random.PRNGKey(0)
    kp, kx = jax.random.split(key)
    params = init_params(kp)

    # Small batch of 16 samples with 20 features each (x.view(-1, 20)).
    x = jax.random.normal(kx, (16, 20), jnp.float32)

    out = jax.block_until_ready(position_predictor(x, params))
    assert out.shape == (16, 2)

    # Tight check against a reference that uses the identical mixed precision.
    ref_mixed = reference_forward_mixed(x, params)
    assert jnp.allclose(out, ref_mixed, atol=1e-3, rtol=1e-3), (
        float(jnp.max(jnp.abs(out - ref_mixed))))

    # Loose sanity check against the full-f32 PyTorch-equivalent forward.
    ref_f32 = reference_forward_f32(x, params)
    assert jnp.allclose(out, ref_f32, atol=5e-2, rtol=5e-2), (
        float(jnp.max(jnp.abs(out - ref_f32))))

    print("KERNEL_OK")
</pallas_src>

<mosaic_0001>
module attributes {stable_mosaic.version = 11 : i64} {
  func.func @mlp_kernel(%arg0: i32, %arg1: memref<8x20xf32, #tpu.memory_space<vmem>>, %arg2: memref<20x64xbf16, #tpu.memory_space<vmem>>, %arg3: memref<1x64xf32, #tpu.memory_space<vmem>>, %arg4: memref<64x128xbf16, #tpu.memory_space<vmem>>, %arg5: memref<1x128xf32, #tpu.memory_space<vmem>>, %arg6: memref<128x64xbf16, #tpu.memory_space<vmem>>, %arg7: memref<1x64xf32, #tpu.memory_space<vmem>>, %arg8: memref<64x128xbf16, #tpu.memory_space<vmem>>, %arg9: memref<1x128xf32, #tpu.memory_space<vmem>>, %arg10: memref<8x128xf32, #tpu.memory_space<vmem>>) attributes {dimension_semantics = [#tpu.dimension_semantics<parallel>], iteration_bounds = array<i64: 2>, scalar_prefetch = 0 : i64, scratch_operands = 0 : i64, tpu.core_type = #tpu.core_type<tc>, window_params = [{transform_indices = @transform_0, window_bounds = array<i64: 8, 20>}, {pipeline_mode = #tpu.pipeline_mode<synchronous>, transform_indices = @transform_1, window_bounds = array<i64: 20, 64>}, {pipeline_mode = #tpu.pipeline_mode<synchronous>, transform_indices = @transform_2, window_bounds = array<i64: 1, 64>}, {pipeline_mode = #tpu.pipeline_mode<synchronous>, transform_indices = @transform_3, window_bounds = array<i64: 64, 128>}, {pipeline_mode = #tpu.pipeline_mode<synchronous>, transform_indices = @transform_4, window_bounds = array<i64: 1, 128>}, {pipeline_mode = #tpu.pipeline_mode<synchronous>, transform_indices = @transform_5, window_bounds = array<i64: 128, 64>}, {pipeline_mode = #tpu.pipeline_mode<synchronous>, transform_indices = @transform_6, window_bounds = array<i64: 1, 64>}, {pipeline_mode = #tpu.pipeline_mode<synchronous>, transform_indices = @transform_7, window_bounds = array<i64: 64, 128>}, {pipeline_mode = #tpu.pipeline_mode<synchronous>, transform_indices = @transform_8, window_bounds = array<i64: 1, 128>}, {transform_indices = @transform_9, window_bounds = array<i64: 8, 128>}]} {
    %c0 = arith.constant 0 : index
    %c0_0 = arith.constant 0 : index
    %0 = vector.load %arg1[%c0, %c0_0] : memref<8x20xf32, #tpu.memory_space<vmem>>, vector<8x20xf32>
    %1 = arith.truncf %0 : vector<8x20xf32> to vector<8x20xbf16>
    %c0_1 = arith.constant 0 : index
    %c0_2 = arith.constant 0 : index
    %2 = vector.load %arg2[%c0_1, %c0_2] : memref<20x64xbf16, #tpu.memory_space<vmem>>, vector<20x64xbf16>
    %cst = arith.constant dense<0.000000e+00> : vector<8x64xf32>
    %3 = tpu.matmul %1, %2, %cst {dimension_numbers = #tpu.dot_dimension_numbers<[1], [0], [0], [1], [0, 0, 1, 1], [], []>} : vector<8x20xbf16>, vector<20x64xbf16>, vector<8x64xf32> -> vector<8x64xf32>
    %c0_3 = arith.constant 0 : index
    %c0_4 = arith.constant 0 : index
    %4 = vector.load %arg3[%c0_3, %c0_4] : memref<1x64xf32, #tpu.memory_space<vmem>>, vector<1x64xf32>
    %5 = vector.broadcast %4 : vector<1x64xf32> to vector<8x64xf32>
    %6 = arith.addf %3, %5 : vector<8x64xf32>
    %cst_5 = arith.constant 0.000000e+00 : f32
    %7 = vector.broadcast %cst_5 : f32 to vector<8x64xf32>
    %8 = arith.maximumf %6, %7 : vector<8x64xf32>
    %9 = arith.truncf %8 : vector<8x64xf32> to vector<8x64xbf16>
    %c0_6 = arith.constant 0 : index
    %c0_7 = arith.constant 0 : index
    %10 = vector.load %arg4[%c0_6, %c0_7] : memref<64x128xbf16, #tpu.memory_space<vmem>>, vector<64x128xbf16>
    %cst_8 = arith.constant dense<0.000000e+00> : vector<8x128xf32>
    %11 = tpu.matmul %9, %10, %cst_8 {dimension_numbers = #tpu.dot_dimension_numbers<[1], [0], [0], [1], [0, 0, 1, 1], [], []>} : vector<8x64xbf16>, vector<64x128xbf16>, vector<8x128xf32> -> vector<8x128xf32>
    %c0_9 = arith.constant 0 : index
    %c0_10 = arith.constant 0 : index
    %12 = vector.load %arg5[%c0_9, %c0_10] : memref<1x128xf32, #tpu.memory_space<vmem>>, vector<1x128xf32>
    %13 = vector.broadcast %12 : vector<1x128xf32> to vector<8x128xf32>
    %14 = arith.addf %11, %13 : vector<8x128xf32>
    %cst_11 = arith.constant 0.000000e+00 : f32
    %15 = vector.broadcast %cst_11 : f32 to vector<8x128xf32>
    %16 = arith.maximumf %14, %15 : vector<8x128xf32>
    %17 = arith.truncf %16 : vector<8x128xf32> to vector<8x128xbf16>
    %c0_12 = arith.constant 0 : index
    %c0_13 = arith.constant 0 : index
    %18 = vector.load %arg6[%c0_12, %c0_13] : memref<128x64xbf16, #tpu.memory_space<vmem>>, vector<128x64xbf16>
    %cst_14 = arith.constant dense<0.000000e+00> : vector<8x64xf32>
    %19 = tpu.matmul %17, %18, %cst_14 {dimension_numbers = #tpu.dot_dimension_numbers<[1], [0], [0], [1], [0, 0, 1, 1], [], []>} : vector<8x128xbf16>, vector<128x64xbf16>, vector<8x64xf32> -> vector<8x64xf32>
    %c0_15 = arith.constant 0 : index
    %c0_16 = arith.constant 0 : index
    %20 = vector.load %arg7[%c0_15, %c0_16] : memref<1x64xf32, #tpu.memory_space<vmem>>, vector<1x64xf32>
    %21 = vector.broadcast %20 : vector<1x64xf32> to vector<8x64xf32>
    %22 = arith.addf %19, %21 : vector<8x64xf32>
    %cst_17 = arith.constant 0.000000e+00 : f32
    %23 = vector.broadcast %cst_17 : f32 to vector<8x64xf32>
    %24 = arith.maximumf %22, %23 : vector<8x64xf32>
    %25 = arith.truncf %24 : vector<8x64xf32> to vector<8x64xbf16>
    %c0_18 = arith.constant 0 : index
    %c0_19 = arith.constant 0 : index
    %26 = vector.load %arg8[%c0_18, %c0_19] : memref<64x128xbf16, #tpu.memory_space<vmem>>, vector<64x128xbf16>
    %cst_20 = arith.constant dense<0.000000e+00> : vector<8x128xf32>
    %27 = tpu.matmul %25, %26, %cst_20 {dimension_numbers = #tpu.dot_dimension_numbers<[1], [0], [0], [1], [0, 0, 1, 1], [], []>} : vector<8x64xbf16>, vector<64x128xbf16>, vector<8x128xf32> -> vector<8x128xf32>
    %c0_21 = arith.constant 0 : index
    %c0_22 = arith.constant 0 : index
    %28 = vector.load %arg9[%c0_21, %c0_22] : memref<1x128xf32, #tpu.memory_space<vmem>>, vector<1x128xf32>
    %29 = vector.broadcast %28 : vector<1x128xf32> to vector<8x128xf32>
    %30 = arith.addf %27, %29 : vector<8x128xf32>
    %c0_23 = arith.constant 0 : index
    %c0_24 = arith.constant 0 : index
    %31 = vector.load %arg10[%c0_23, %c0_24] : memref<8x128xf32, #tpu.memory_space<vmem>>, vector<8x128xf32>
    tpu.vector_store %arg10[%c0_23, %c0_24], %30 {strides = array<i32>} : memref<8x128xf32, #tpu.memory_space<vmem>>, vector<8x128xf32>,
    return
  }
  func.func @transform_0(%arg0: i32) -> (i32, i32) {
    %c0_i32 = arith.constant 0 : i32
    %c0_i32_0 = arith.constant 0 : i32
    return %arg0, %c0_i32 : i32, i32
  }
  func.func @transform_1(%arg0: i32) -> (i32, i32) {
    %c0_i32 = arith.constant 0 : i32
    %c0_i32_0 = arith.constant 0 : i32
    %c0_i32_1 = arith.constant 0 : i32
    return %c0_i32, %c0_i32_0 : i32, i32
  }
  func.func @transform_2(%arg0: i32) -> (i32, i32) {
    %c0_i32 = arith.constant 0 : i32
    %c0_i32_0 = arith.constant 0 : i32
    %c0_i32_1 = arith.constant 0 : i32
    return %c0_i32, %c0_i32_0 : i32, i32
  }
  func.func @transform_3(%arg0: i32) -> (i32, i32) {
    %c0_i32 = arith.constant 0 : i32
    %c0_i32_0 = arith.constant 0 : i32
    %c0_i32_1 = arith.constant 0 : i32
    return %c0_i32, %c0_i32_0 : i32, i32
  }
  func.func @transform_4(%arg0: i32) -> (i32, i32) {
    %c0_i32 = arith.constant 0 : i32
    %c0_i32_0 = arith.constant 0 : i32
    %c0_i32_1 = arith.constant 0 : i32
    return %c0_i32, %c0_i32_0 : i32, i32
  }
  func.func @transform_5(%arg0: i32) -> (i32, i32) {
    %c0_i32 = arith.constant 0 : i32
    %c0_i32_0 = arith.constant 0 : i32
    %c0_i32_1 = arith.constant 0 : i32
    return %c0_i32, %c0_i32_0 : i32, i32
  }
  func.func @transform_6(%arg0: i32) -> (i32, i32) {
    %c0_i32 = arith.constant 0 : i32
    %c0_i32_0 = arith.constant 0 : i32
    %c0_i32_1 = arith.constant 0 : i32
    return %c0_i32, %c0_i32_0 : i32, i32
  }
  func.func @transform_7(%arg0: i32) -> (i32, i32) {
    %c0_i32 = arith.constant 0 : i32
    %c0_i32_0 = arith.constant 0 : i32
    %c0_i32_1 = arith.constant 0 : i32
    return %c0_i32, %c0_i32_0 : i32, i32
  }
  func.func @transform_8(%arg0: i32) -> (i32, i32) {
    %c0_i32 = arith.constant 0 : i32
    %c0_i32_0 = arith.constant 0 : i32
    %c0_i32_1 = arith.constant 0 : i32
    return %c0_i32, %c0_i32_0 : i32, i32
  }
  func.func @transform_9(%arg0: i32) -> (i32, i32) {
    %c0_i32 = arith.constant 0 : i32
    %c0_i32_0 = arith.constant 0 : i32
    return %arg0, %c0_i32 : i32, i32
  }
}

</mosaic_0001>

<llo_original>
// kernel: tpu_custom_call.1
$region0: #{tpu_custom_call.1}
  #allocation0 [shape = 'u32[]', space=smem, size = 0x4, offset = 0x4, fixed_abs, tag = 'smem constant byte address 0x4 - core index']
  #allocation1 [shape = 'u32[144,128]{1,0:T(1,128)}', space=vmem, size = 0x12000, scoped, tag = 'internal scratch']
  %s0 = inlined_call_operand.vmem [shape: f32[16,20], index: 0, kind: input, shape index: {}]
  %s1 = inlined_call_operand.vmem [shape: bf16[20,64], index: 1, kind: input, shape index: {}]
  %s2 = inlined_call_operand.vmem [shape: f32[1,64], index: 2, kind: input, shape index: {}]
  %s3 = inlined_call_operand.vmem [shape: bf16[64,128], index: 3, kind: input, shape index: {}]
  %s4 = inlined_call_operand.vmem [shape: f32[1,128], index: 4, kind: input, shape index: {}]
  %s5 = inlined_call_operand.vmem [shape: bf16[128,64], index: 5, kind: input, shape index: {}]
  %s6 = inlined_call_operand.vmem [shape: f32[1,64], index: 6, kind: input, shape index: {}]
  %s7 = inlined_call_operand.vmem [shape: bf16[64,128], index: 7, kind: input, shape index: {}]
  %s8 = inlined_call_operand.vmem [shape: f32[1,128], index: 8, kind: input, shape index: {}]
  %s9 = inlined_call_operand.hbm [shape: f32[16,128], index: 9, kind: output, shape index: {}]
  %s10 = sld [smem:[#allocation0]]
  $region69: #{tpu_custom_call.1} parent=0
    _
  %s12 = ssub.s32 1, %s10
  %s13 = scalar_select 0, %s12, %s10
  $region1: #{tpu_custom_call.1} parent=0
    #allocation2 [shape = 'u8[8192]{0}', space=vmem, size = 0x2000, scoped, tag = 'output window, operand 0']
    #allocation3 [shape = 's32[2]{0}', space=sflag, size = 0x8, scoped, tag = 'scoped memory for tpu_custom_call.1']
    %14 = vsyncpa [#allocation3], 0
    %s15 = scalar_lea.sflag [#allocation3], 1
    %16 = vsyncpa %s15, 0
    loop: start=0, step=1, limit=4
    $region2: #{tpu_custom_call.1} parent=1 // loop_pre_header
      _
    $region3: #{tpu_custom_call.1} parent=1 // loop_header
      %s18 = sphi 0, %s22
      %p19 = scmp.ge.s32.totalorder %s18, 4
      %s28 = sphi 0, %s30
      %s31 = sphi 0, %s28
      %s32 = sphi 0, %s31
      %s48 = sphi 0, %s32
      %s52 = sphi 0, %s52
      %s54 = sphi 0, %s52
      %s55 = sphi 0, %s54
      %s69 = sphi 0, %s55
      %s73 = sphi 0, %s73
      %s75 = sphi 0, %s73
      %s76 = sphi 0, %s75
      %s90 = sphi 0, %s76
      %s94 = sphi 0, %s94
      %s96 = sphi 0, %s94
      %s97 = sphi 0, %s96
      %s111 = sphi 0, %s97
      %s115 = sphi 0, %s115
      %s117 = sphi 0, %s115
      %s118 = sphi 0, %s117
      %s132 = sphi 0, %s118
      %s136 = sphi 0, %s136
      %s138 = sphi 0, %s136
      %s139 = sphi 0, %s138
      %s153 = sphi 0, %s139
      %s157 = sphi 0, %s157
      %s159 = sphi 0, %s157
      %s160 = sphi 0, %s159
      %s174 = sphi 0, %s160
      %s178 = sphi 0, %s178
      %s180 = sphi 0, %s178
      %s181 = sphi 0, %s180
      %s195 = sphi 0, %s181
      %s199 = sphi 0, %s199
      %s201 = sphi 0, %s199
      %s202 = sphi 0, %s201
      %s216 = sphi 0, %s202
      %s222 = sphi 0, %s224
      %s225 = sphi 0, %s222
      %s226 = sphi 0, %s225
      %s242 = sphi 0, %s226
    $region4: #{tpu_custom_call.1} parent=1 // loop_header_branch
      %21 = sbr.rel (%p19) target = $region8
    $region5: #{tpu_custom_call.1} parent=1 // loop_body
      %s23 = ssub.s32 %s18, 1
      %s24 = ssub.s32 %s18, 2
      %s25 = sadd.s32 %s18, 1
      %s26 = ssub.s32 %s18, %s25
      %p27 = scmp.eq.s32.totalorder %s26, 0
      %s29 = sadd.s32 %s28, 1
      %s30 = scalar_select %p27, %s28, %s29
      %p33 = pneg %p27
      %p34 = scmp.eq.s32.totalorder %s18, 1
      %p35 = por %p33, %p34
      %p36 = scmp.ne.s32.totalorder %s28, %s31
      %p37 = scmp.eq.s32.totalorder %s18, 0
      %p38 = por %p36, %p37
      %p39 = scmp.ne.s32.totalorder %s28, %s31
      %p40 = scmp.eq.s32.totalorder %s23, 1
      %p41 = por %p39, %p40
      %p42 = scmp.ne.s32.totalorder %s31, %s32
      %p43 = scmp.eq.s32.totalorder %s23, 0
      %p44 = por %p42, %p43
      %p45 = scmp.ne.s32.totalorder %s31, %s32
      %p46 = scmp.eq.s32.totalorder %s24, 1
      %p47 = por %p45, %p46
      %p49 = scmp.ne.s32.totalorder %s32, %s48
      %p50 = scmp.eq.s32.totalorder %s24, 0
      %p51 = por %p49, %p50
      %s53 = sadd.s32 %s52, 1
      %p56 = scmp.eq.s32.totalorder %s18, 1
      %p57 = scmp.ne.s32.totalorder %s52, %s54
      %p58 = scmp.eq.s32.totalorder %s18, 0
      %p59 = por %p57, %p58
      %p60 = scmp.ne.s32.totalorder %s52, %s54
      %p61 = scmp.eq.s32.totalorder %s23, 1
      %p62 = por %p60, %p61
      %p63 = scmp.ne.s32.totalorder %s54, %s55
      %p64 = scmp.eq.s32.totalorder %s23, 0
      %p65 = por %p63, %p64
      %p66 = scmp.ne.s32.totalorder %s54, %s55
      %p67 = scmp.eq.s32.totalorder %s24, 1
      %p68 = por %p66, %p67
      %p70 = scmp.ne.s32.totalorder %s55, %s69
      %p71 = scmp.eq.s32.totalorder %s24, 0
      %p72 = por %p70, %p71
      %s74 = sadd.s32 %s73, 1
      %p77 = scmp.eq.s32.totalorder %s18, 1
      %p78 = scmp.ne.s32.totalorder %s73, %s75
      %p79 = scmp.eq.s32.totalorder %s18, 0
      %p80 = por %p78, %p79
      %p81 = scmp.ne.s32.totalorder %s73, %s75
      %p82 = scmp.eq.s32.totalorder %s23, 1
      %p83 = por %p81, %p82
      %p84 = scmp.ne.s32.totalorder %s75, %s76
      %p85 = scmp.eq.s32.totalorder %s23, 0
      %p86 = por %p84, %p85
      %p87 = scmp.ne.s32.totalorder %s75, %s76
      %p88 = scmp.eq.s32.totalorder %s24, 1
      %p89 = por %p87, %p88
      %p91 = scmp.ne.s32.totalorder %s76, %s90
      %p92 = scmp.eq.s32.totalorder %s24, 0
      %p93 = por %p91, %p92
      %s95 = sadd.s32 %s94, 1
      %p98 = scmp.eq.s32.totalorder %s18, 1
      %p99 = scmp.ne.s32.totalorder %s94, %s96
      %p100 = scmp.eq.s32.totalorder %s18, 0
      %p101 = por %p99, %p100
      %p102 = scmp.ne.s32.totalorder %s94, %s96
      %p103 = scmp.eq.s32.totalorder %s23, 1
      %p104 = por %p102, %p103
      %p105 = scmp.ne.s32.totalorder %s96, %s97
      %p106 = scmp.eq.s32.totalorder %s23, 0
      %p107 = por %p105, %p106
      %p108 = scmp.ne.s32.totalorder %s96, %s97
      %p109 = scmp.eq.s32.totalorder %s24, 1
      %p110 = por %p108, %p109
      %p112 = scmp.ne.s32.totalorder %s97, %s111
      %p113 = scmp.eq.s32.totalorder %s24, 0
      %p114 = por %p112, %p113
      %s116 = sadd.s32 %s115, 1
      %p119 = scmp.eq.s32.totalorder %s18, 1
      %p120 = scmp.ne.s32.totalorder %s115, %s117
      %p121 = scmp.eq.s32.totalorder %s18, 0
      %p122 = por %p120, %p121
      %p123 = scmp.ne.s32.totalorder %s115, %s117
      %p124 = scmp.eq.s32.totalorder %s23, 1
      %p125 = por %p123, %p124
      %p126 = scmp.ne.s32.totalorder %s117, %s118
      %p127 = scmp.eq.s32.totalorder %s23, 0
      %p128 = por %p126, %p127
      %p129 = scmp.ne.s32.totalorder %s117, %s118
      %p130 = scmp.eq.s32.totalorder %s24, 1
      %p131 = por %p129, %p130
      %p133 = scmp.ne.s32.totalorder %s118, %s132
      %p134 = scmp.eq.s32.totalorder %s24, 0
      %p135 = por %p133, %p134
      %s137 = sadd.s32 %s136, 1
      %p140 = scmp.eq.s32.totalorder %s18, 1
      %p141 = scmp.ne.s32.totalorder %s136, %s138
      %p142 = scmp.eq.s32.totalorder %s18, 0
      %p143 = por %p141, %p142
      %p144 = scmp.ne.s32.totalorder %s136, %s138
      %p145 = scmp.eq.s32.totalorder %s23, 1
      %p146 = por %p144, %p145
      %p147 = scmp.ne.s32.totalorder %s138, %s139
      %p148 = scmp.eq.s32.totalorder %s23, 0
      %p149 = por %p147, %p148
      %p150 = scmp.ne.s32.totalorder %s138, %s139
      %p151 = scmp.eq.s32.totalorder %s24, 1
      %p152 = por %p150, %p151
      %p154 = scmp.ne.s32.totalorder %s139, %s153
      %p155 = scmp.eq.s32.totalorder %s24, 0
      %p156 = por %p154, %p155
      %s158 = sadd.s32 %s157, 1
      %p161 = scmp.eq.s32.totalorder %s18, 1
      %p162 = scmp.ne.s32.totalorder %s157, %s159
      %p163 = scmp.eq.s32.totalorder %s18, 0
      %p164 = por %p162, %p163
      %p165 = scmp.ne.s32.totalorder %s157, %s159
      %p166 = scmp.eq.s32.totalorder %s23, 1
      %p167 = por %p165, %p166
      %p168 = scmp.ne.s32.totalorder %s159, %s160
      %p169 = scmp.eq.s32.totalorder %s23, 0
      %p170 = por %p168, %p169
      %p171 = scmp.ne.s32.totalorder %s159, %s160
      %p172 = scmp.eq.s32.totalorder %s24, 1
      %p173 = por %p171, %p172
      %p175 = scmp.ne.s32.totalorder %s160, %s174
      %p176 = scmp.eq.s32.totalorder %s24, 0
      %p177 = por %p175, %p176
      %s179 = sadd.s32 %s178, 1
      %p182 = scmp.eq.s32.totalorder %s18, 1
      %p183 = scmp.ne.s32.totalorder %s178, %s180
      %p184 = scmp.eq.s32.totalorder %s18, 0
      %p185 = por %p183, %p184
      %p186 = scmp.ne.s32.totalorder %s178, %s180
      %p187 = scmp.eq.s32.totalorder %s23, 1
      %p188 = por %p186, %p187
      %p189 = scmp.ne.s32.totalorder %s180, %s181
      %p190 = scmp.eq.s32.totalorder %s23, 0
      %p191 = por %p189, %p190
      %p192 = scmp.ne.s32.totalorder %s180, %s181
      %p193 = scmp.eq.s32.totalorder %s24, 1
      %p194 = por %p192, %p193
      %p196 = scmp.ne.s32.totalorder %s181, %s195
      %p197 = scmp.eq.s32.totalorder %s24, 0
      %p198 = por %p196, %p197
      %s200 = sadd.s32 %s199, 1
      %p203 = scmp.eq.s32.totalorder %s18, 1
      %p204 = scmp.ne.s32.totalorder %s199, %s201
      %p205 = scmp.eq.s32.totalorder %s18, 0
      %p206 = por %p204, %p205
      %p207 = scmp.ne.s32.totalorder %s199, %s201
      %p208 = scmp.eq.s32.totalorder %s23, 1
      %p209 = por %p207, %p208
      %p210 = scmp.ne.s32.totalorder %s201, %s202
      %p211 = scmp.eq.s32.totalorder %s23, 0
      %p212 = por %p210, %p211
      %p213 = scmp.ne.s32.totalorder %s201, %s202
      %p214 = scmp.eq.s32.totalorder %s24, 1
      %p215 = por %p213, %p214
      %p217 = scmp.ne.s32.totalorder %s202, %s216
      %p218 = scmp.eq.s32.totalorder %s24, 0
      %p219 = por %p217, %p218
      %s220 = ssub.s32 %s18, %s25
      %p221 = scmp.eq.s32.totalorder %s220, 0
      %s223 = sadd.s32 %s222, 1
      %s224 = scalar_select %p221, %s222, %s223
      %p227 = pneg %p221
      %p228 = scmp.eq.s32.totalorder %s18, 1
      %p229 = por %p227, %p228
      %p230 = scmp.ne.s32.totalorder %s222, %s225
      %p231 = scmp.eq.s32.totalorder %s18, 0
      %p232 = por %p230, %p231
      %p233 = scmp.ne.s32.totalorder %s222, %s225
      %p234 = scmp.eq.s32.totalorder %s23, 1
      %p235 = por %p233, %p234
      %p236 = scmp.ne.s32.totalorder %s225, %s226
      %p237 = scmp.eq.s32.totalorder %s23, 0
      %p238 = por %p236, %p237
      %p239 = scmp.ne.s32.totalorder %s225, %s226
      %p240 = scmp.eq.s32.totalorder %s24, 1
      %p241 = por %p239, %p240
      %p243 = scmp.ne.s32.totalorder %s226, %s242
      %p244 = scmp.eq.s32.totalorder %s24, 0
      %p245 = por %p243, %p244
      %p246 = scmp.le.s32.totalorder 1, %s18
      %p247 = scmp.lt.s32.totalorder %s18, 3
      %p248 = pnand %p246, %p247
      %p249 = pneg %p248
      // Predicated region
      $region9: #{tpu_custom_call.1} parent=5 // pred_check
        _
      $region10: #{tpu_custom_call.1} parent=5 // pred_check_branch
        %251 = sbr.rel (%p248) target = $region12
      $region11: #{tpu_custom_call.1} parent=5 // pred_region
        %s252 = ssub.s32 %s18, 1
        // Predicated region
        $region13: #{tpu_custom_call.1} parent=11 // pred_check
          %p253 = pneg %p65
        $region14: #{tpu_custom_call.1} parent=11 // pred_check_branch
          %255 = sbr.rel (%p253) target = $region16
        $region15: #{tpu_custom_call.1} parent=11 // pred_region
          _
        $region16: #{tpu_custom_call.1} parent=11 // pred_fallthru
          _
        // Predicated region
        $region17: #{tpu_custom_call.1} parent=11 // pred_check
          %p256 = pneg %p86
        $region18: #{tpu_custom_call.1} parent=11 // pred_check_branch
          %258 = sbr.rel (%p256) target = $region20
        $region19: #{tpu_custom_call.1} parent=11 // pred_region
          _
        $region20: #{tpu_custom_call.1} parent=11 // pred_fallthru
          _
        // Predicated region
        $region21: #{tpu_custom_call.1} parent=11 // pred_check
          %p259 = pneg %p107
        $region22: #{tpu_custom_call.1} parent=11 // pred_check_branch
          %261 = sbr.rel (%p259) target = $region24
        $region23: #{tpu_custom_call.1} parent=11 // pred_region
          _
        $region24: #{tpu_custom_call.1} parent=11 // pred_fallthru
          _
        // Predicated region
        $region25: #{tpu_custom_call.1} parent=11 // pred_check
          %p262 = pneg %p128
        $region26: #{tpu_custom_call.1} parent=11 // pred_check_branch
          %264 = sbr.rel (%p262) target = $region28
        $region27: #{tpu_custom_call.1} parent=11 // pred_region
          _
        $region28: #{tpu_custom_call.1} parent=11 // pred_fallthru
          _
        // Predicated region
        $region29: #{tpu_custom_call.1} parent=11 // pred_check
          %p265 = pneg %p149
        $region30: #{tpu_custom_call.1} parent=11 // pred_check_branch
          %267 = sbr.rel (%p265) target = $region32
        $region31: #{tpu_custom_call.1} parent=11 // pred_region
          _
        $region32: #{tpu_custom_call.1} parent=11 // pred_fallthru
          _
        // Predicated region
        $region33: #{tpu_custom_call.1} parent=11 // pred_check
          %p268 = pneg %p170
        $region34: #{tpu_custom_call.1} parent=11 // pred_check_branch
          %270 = sbr.rel (%p268) target = $region36
        $region35: #{tpu_custom_call.1} parent=11 // pred_region
          _
        $region36: #{tpu_custom_call.1} parent=11 // pred_fallthru
          _
        // Predicated region
        $region37: #{tpu_custom_call.1} parent=11 // pred_check
          %p271 = pneg %p191
        $region38: #{tpu_custom_call.1} parent=11 // pred_check_branch
          %273 = sbr.rel (%p271) target = $region40
        $region39: #{tpu_custom_call.1} parent=11 // pred_region
          _
        $region40: #{tpu_custom_call.1} parent=11 // pred_fallthru
          _
        // Predicated region
        $region41: #{tpu_custom_call.1} parent=11 // pred_check
          %p274 = pneg %p212
        $region42: #{tpu_custom_call.1} parent=11 // pred_check_branch
          %276 = sbr.rel (%p274) target = $region44
        $region43: #{tpu_custom_call.1} parent=11 // pred_region
          _
        $region44: #{tpu_custom_call.1} parent=11 // pred_fallthru
          _
      $region12: #{tpu_custom_call.1} parent=5 // pred_fallthru
        _
      %p277 = scmp.lt.s32.totalorder %s18, 2
      // Predicated region
      $region45: #{tpu_custom_call.1} parent=5 // pred_check
        %p278 = pneg %p277
      $region46: #{tpu_custom_call.1} parent=5 // pred_check_branch
        %280 = sbr.rel (%p278) target = $region48
      $region47: #{tpu_custom_call.1} parent=5 // pred_region
        // Predicated region
        $region49: #{tpu_custom_call.1} parent=47 // pred_check
          %p281 = pneg %p38
        $region50: #{tpu_custom_call.1} parent=47 // pred_check_branch
          %283 = sbr.rel (%p281) target = $region52
        $region51: #{tpu_custom_call.1} parent=47 // pred_region
          %p284 = scmp.lt.s32.totalorder %s18, 1
          %s285 = scalar_select %p284, %s18, 1
          %s286 = smul.addr %s285, 8
          %s287 = scalar_lea.vmem %s0, %s286
        $region52: #{tpu_custom_call.1} parent=47 // pred_fallthru
          _
      $region48: #{tpu_custom_call.1} parent=5 // pred_fallthru
        _
      %p288 = scmp.le.s32.totalorder 1, %s18
      %p289 = scmp.lt.s32.totalorder %s18, 3
      %p290 = pnand %p288, %p289
      %p291 = pneg %p290
      // Predicated region
      $region53: #{tpu_custom_call.1} parent=5 // pred_check
        _
      $region54: #{tpu_custom_call.1} parent=5 // pred_check_branch
        %293 = sbr.rel (%p290) target = $region56
      $region55: #{tpu_custom_call.1} parent=5 // pred_region
        %s294 = ssub.s32 %s18, 1
        %p295 = scmp.lt.s32.totalorder %s23, 1
        %s296 = scalar_select %p295, %s23, 1
        %s297 = smul.addr %s296, 8
        %s298 = scalar_lea.vmem %s0, %s297
        %p299 = pneg %p44
        %p300 = pneg %p41
        %p301 = pneg %p65
        %p302 = pneg %p62
        %p303 = pneg %p86
        %p304 = pneg %p83
        %p305 = pneg %p107
        %p306 = pneg %p104
        %p307 = pneg %p128
        %p308 = pneg %p125
        %p309 = pneg %p149
        %p310 = pneg %p146
        %p311 = pneg %p170
        %p312 = pneg %p167
        %p313 = pneg %p191
        %p314 = pneg %p188
        %p315 = pneg %p212
        %p316 = pneg %p209
        %p317 = pneg %p238
        %p318 = pneg %p235
        %s319 = sand.u32 %s225, 1
        %s320 = scalar_lea.sflag [#allocation3], %s319
        %s321 = sand.u32 %s225, 1
        %s322 = smul.addr %s321, 8
        %s323 = scalar_lea.vmem [#allocation2], %s322
        %p324 = scmp.lt.s32.totalorder %s23, 1
        %s325 = scalar_select %p324, %s23, 1
        %s326 = smul.addr %s325, 8
        %s327 = scalar_lea.vmem %s0, %s326
        %v329 = vld [vmem:[%s327] sm:$0xff]
        %v330 = vpack.c.bf16 %v329, %v329
        %v331 = vld [vmem:[%s1] sm:$0xf]
        %v332 = vld [vmem:[%s1 + $0x4] sm:$0xf]
        %v333 = vld [vmem:[%s1 + $0x8] sm:$0x3]
        %v334 = vld [vmem:[%s2] sm:$0x1]
        %v336 = vlaneseq
        %v337 = vshrl.u32 %v336, 7
        %v338 = vsub.s32 0, %v337
        %v339 = vrot.slane %v334, %v338
        %v344 = vunpack.c.l.b16 %v331
        %v345 = vunpack.c.l.b16 %v332
        %v346 = vunpack.c.l.b16 %v333
        %v347 = vpack.c.b16 %v345, %v344
        %v348 = vpack.c.b16 %v346, %v346
        %vm350 = vcmask 162816
        %v352 = vsel %vm350, %v330, 0
        %vm354 = vcmask 1041408
        %v356 = vsel %vm354, %v348, 0
        %358 = vmatprep.subr.bf16.mxu0 0
        %359 = vmatpush1.bf16.msra.mxu0 %v347
        %360 = vmatprep.subr.bf16.mxu0 0
        %361 = vmatpush1.bf16.msra.mxu0 %v356
        %362 = vmatprep.subr.bf16.mxu0 0
        %363 = vmatpush1.bf16.msra.mxu0 0
        %364 = vmatprep.subr.bf16.mxu0 0
        %365 = vmatpush1.bf16.msra.mxu0 0
        %366 = vmatprep.subr.bf16.mxu0 0
        %367 = vmatpush1.bf16.msra.mxu0 0
        %368 = vmatprep.subr.bf16.mxu0 0
        %369 = vmatpush1.bf16.msra.mxu0 0
        %370 = vmatprep.subr.bf16.mxu0 0
        %371 = vmatpush1.bf16.msra.mxu0 0
        %372 = vmatprep.subr.bf16.mxu0 0
        %373 = vmatpush1.bf16.msra.mxu0 0
        %374 = vmatprep.subr.bf16.mxu0 0
        %375 = vmatpush1.bf16.msra.mxu0 0
        %376 = vmatprep.subr.bf16.mxu0 0
        %377 = vmatpush1.bf16.msra.mxu0 0
        %378 = vmatprep.subr.bf16.mxu0 0
        %379 = vmatpush1.bf16.msra.mxu0 0
        %380 = vmatprep.subr.bf16.mxu0 0
        %381 = vmatpush1.bf16.msra.mxu0 0
        %382 = vmatprep.subr.bf16.mxu0 0
        %383 = vmatpush1.bf16.msra.mxu0 0
        %384 = vmatprep.subr.bf16.mxu0 0
        %385 = vmatpush1.bf16.msra.mxu0 0
        %386 = vmatprep.subr.bf16.mxu0 0
        %387 = vmatpush1.bf16.msra.mxu0 0
        %388 = vmatprep.subr.bf16.mxu0 0
        %389 = vmatpush1.bf16.msra.mxu0 0
        %390 = vmatprep.mubr.bf16.mxu0 0
        %391 = vmatmul.mubr.bf16.gmra.mrb[0].mxu0 %v352
        %v392 = vpop.f32.mrb[0].mxu0
        %v393 = vadd.f32 %v339, %v392
        %v394 = vpop.f32.mrb[0].mxu0
        %v395 = vpop.f32.mrb[0].mxu0
        %v396 = vpop.f32.mrb[0].mxu0
        %397 = vdwg.mxu0
        %v398 = vmax.f32 %v393, 0.0
        %v399 = vpack.c.bf16 %v398, %v398
        %v400 = vld [vmem:[%s3] sm:$0xf]
        %v401 = vld [vmem:[%s3 + $0x4] sm:$0xf]
        %v402 = vld [vmem:[%s3 + $0x8] sm:$0xf]
        %v403 = vld [vmem:[%s3 + $0xc] sm:$0xf]
        %v404 = vld [vmem:[%s3 + $0x10] sm:$0xf]
        %v405 = vld [vmem:[%s3 + $0x14] sm:$0xf]
        %v406 = vld [vmem:[%s3 + $0x18] sm:$0xf]
        %v407 = vld [vmem:[%s3 + $0x1c] sm:$0xf]
        %v408 = vld [vmem:[%s4] sm:$0x1]
        %v410 = vlaneseq
        %v411 = vshrl.u32 %v410, 7
        %v412 = vsub.s32 0, %v411
        %v413 = vrot.slane %v408, %v412
        %v423 = vunpack.c.l.b16 %v400
        %v424 = vunpack.c.l.b16 %v401
        %v425 = vunpack.c.l.b16 %v402
        %v426 = vunpack.c.l.b16 %v403
        %v427 = vunpack.c.l.b16 %v404
        %v428 = vunpack.c.l.b16 %v405
        %v429 = vunpack.c.l.b16 %v406
        %v430 = vunpack.c.l.b16 %v407
        %v431 = vpack.c.b16 %v424, %v423
        %v432 = vpack.c.b16 %v426, %v425
        %v433 = vpack.c.b16 %v428, %v427
        %v434 = vpack.c.b16 %v430, %v429
        %vm439 = vcmask 523264
        %v441 = vsel %vm439, %v399, 0
        %443 = vmatprep.subr.bf16.mxu0 0
        %444 = vmatpush1.bf16.msra.mxu0 %v431
        %445 = vmatprep.subr.bf16.mxu0 0
        %446 = vmatpush1.bf16.msra.mxu0 %v432
        %447 = vmatprep.subr.bf16.mxu0 0
        %448 = vmatpush1.bf16.msra.mxu0 %v433
        %449 = vmatprep.subr.bf16.mxu0 0
        %450 = vmatpush1.bf16.msra.mxu0 %v434
        %451 = vmatprep.subr.bf16.mxu0 0
        %452 = vmatpush1.bf16.msra.mxu0 0
        %453 = vmatprep.subr.bf16.mxu0 0
        %454 = vmatpush1.bf16.msra.mxu0 0
        %455 = vmatprep.subr.bf16.mxu0 0
        %456 = vmatpush1.bf16.msra.mxu0 0
        %457 = vmatprep.subr.bf16.mxu0 0
        %458 = vmatpush1.bf16.msra.mxu0 0
        %459 = vmatprep.subr.bf16.mxu0 0
        %460 = vmatpush1.bf16.msra.mxu0 0
        %461 = vmatprep.subr.bf16.mxu0 0
        %462 = vmatpush1.bf16.msra.mxu0 0
        %463 = vmatprep.subr.bf16.mxu0 0
        %464 = vmatpush1.bf16.msra.mxu0 0
        %465 = vmatprep.subr.bf16.mxu0 0
        %466 = vmatpush1.bf16.msra.mxu0 0
        %467 = vmatprep.subr.bf16.mxu0 0
        %468 = vmatpush1.bf16.msra.mxu0 0
        %469 = vmatprep.subr.bf16.mxu0 0
        %470 = vmatpush1.bf16.msra.mxu0 0
        %471 = vmatprep.subr.bf16.mxu0 0
        %472 = vmatpush1.bf16.msra.mxu0 0
        %473 = vmatprep.subr.bf16.mxu0 0
        %474 = vmatpush1.bf16.msra.mxu0 0
        %475 = vmatprep.mubr.bf16.mxu0 0
        %476 = vmatmul.mubr.bf16.gmra.mrb[0].mxu0 %v441
        %v477 = vpop.f32.mrb[0].mxu0
        %v478 = vadd.f32 %v413, %v477
        %v479 = vpop.f32.mrb[0].mxu0
        %v480 = vpop.f32.mrb[0].mxu0
        %v481 = vpop.f32.mrb[0].mxu0
        %482 = vdwg.mxu0
        %v483 = vmax.f32 %v478, 0.0
        %v484 = vpack.c.bf16 %v483, %v483
        %v485 = vld [vmem:[%s5] sm:$0xf]
        %v486 = vld [vmem:[%s5 + $0x4] sm:$0xf]
        %v487 = vld [vmem:[%s5 + $0x8] sm:$0xf]
        %v488 = vld [vmem:[%s5 + $0xc] sm:$0xf]
        %v489 = vld [vmem:[%s5 + $0x10] sm:$0xf]
        %v490 = vld [vmem:[%s5 + $0x14] sm:$0xf]
        %v491 = vld [vmem:[%s5 + $0x18] sm:$0xf]
        %v492 = vld [vmem:[%s5 + $0x1c] sm:$0xf]
        %v493 = vld [vmem:[%s5 + $0x20] sm:$0xf]
        %v494 = vld [vmem:[%s5 + $0x24] sm:$0xf]
        %v495 = vld [vmem:[%s5 + $0x28] sm:$0xf]
        %v496 = vld [vmem:[%s5 + $0x2c] sm:$0xf]
        %v497 = vld [vmem:[%s5 + $0x30] sm:$0xf]
        %v498 = vld [vmem:[%s5 + $0x34] sm:$0xf]
        %v499 = vld [vmem:[%s5 + $0x38] sm:$0xf]
        %v500 = vld [vmem:[%s5 + $0x3c] sm:$0xf]
        %v501 = vld [vmem:[%s6] sm:$0x1]
        %v503 = vlaneseq
        %v504 = vshrl.u32 %v503, 7
        %v505 = vsub.s32 0, %v504
        %v506 = vrot.slane %v501, %v505
        %v524 = vunpack.c.l.b16 %v485
        %v525 = vunpack.c.l.b16 %v486
        %v526 = vunpack.c.l.b16 %v487
        %v527 = vunpack.c.l.b16 %v488
        %v528 = vunpack.c.l.b16 %v489
        %v529 = vunpack.c.l.b16 %v490
        %v530 = vunpack.c.l.b16 %v491
        %v531 = vunpack.c.l.b16 %v492
        %v532 = vunpack.c.l.b16 %v493
        %v533 = vunpack.c.l.b16 %v494
        %v534 = vunpack.c.l.b16 %v495
        %v535 = vunpack.c.l.b16 %v496
        %v536 = vunpack.c.l.b16 %v497
        %v537 = vunpack.c.l.b16 %v498
        %v538 = vunpack.c.l.b16 %v499
        %v539 = vunpack.c.l.b16 %v500
        %v540 = vpack.c.b16 %v525, %v524
        %v541 = vpack.c.b16 %v527, %v526
        %v542 = vpack.c.b16 %v529, %v528
        %v543 = vpack.c.b16 %v531, %v530
        %v544 = vpack.c.b16 %v533, %v532
        %v545 = vpack.c.b16 %v535, %v534
        %v546 = vpack.c.b16 %v537, %v536
        %v547 = vpack.c.b16 %v539, %v538
        %556 = vmatprep.subr.bf16.mxu0 0
        %557 = vmatpush1.bf16.msra.mxu0 %v540
        %558 = vmatprep.subr.bf16.mxu0 0
        %559 = vmatpush1.bf16.msra.mxu0 %v541
        %560 = vmatprep.subr.bf16.mxu0 0
        %561 = vmatpush1.bf16.msra.mxu0 %v542
        %562 = vmatprep.subr.bf16.mxu0 0
        %563 = vmatpush1.bf16.msra.mxu0 %v543
        %564 = vmatprep.subr.bf16.mxu0 0
        %565 = vmatpush1.bf16.msra.mxu0 %v544
        %566 = vmatprep.subr.bf16.mxu0 0
        %567 = vmatpush1.bf16.msra.mxu0 %v545
        %568 = vmatprep.subr.bf16.mxu0 0
        %569 = vmatpush1.bf16.msra.mxu0 %v546
        %570 = vmatprep.subr.bf16.mxu0 0
        %571 = vmatpush1.bf16.msra.mxu0 %v547
        %572 = vmatprep.subr.bf16.mxu0 0
        %573 = vmatpush1.bf16.msra.mxu0 0
        %574 = vmatprep.subr.bf16.mxu0 0
        %575 = vmatpush1.bf16.msra.mxu0 0
        %576 = vmatprep.subr.bf16.mxu0 0
        %577 = vmatpush1.bf16.msra.mxu0 0
        %578 = vmatprep.subr.bf16.mxu0 0
        %579 = vmatpush1.bf16.msra.mxu0 0
        %580 = vmatprep.subr.bf16.mxu0 0
        %581 = vmatpush1.bf16.msra.mxu0 0
        %582 = vmatprep.subr.bf16.mxu0 0
        %583 = vmatpush1.bf16.msra.mxu0 0
        %584 = vmatprep.subr.bf16.mxu0 0
        %585 = vmatpush1.bf16.msra.mxu0 0
        %586 = vmatprep.subr.bf16.mxu0 0
        %587 = vmatpush1.bf16.msra.mxu0 0
        %588 = vmatprep.mubr.bf16.mxu0 0
        %589 = vmatmul.mubr.bf16.gmra.mrb[0].mxu0 %v484
        %v590 = vpop.f32.mrb[0].mxu0
        %v591 = vadd.f32 %v506, %v590
        %v592 = vpop.f32.mrb[0].mxu0
        %v593 = vpop.f32.mrb[0].mxu0
        %v594 = vpop.f32.mrb[0].mxu0
        %595 = vdwg.mxu0
        %v596 = vmax.f32 %v591, 0.0
        %v597 = vpack.c.bf16 %v596, %v596
        %v598 = vld [vmem:[%s7] sm:$0xf]
        %v599 = vld [vmem:[%s7 + $0x4] sm:$0xf]
        %v600 = vld [vmem:[%s7 + $0x8] sm:$0xf]
        %v601 = vld [vmem:[%s7 + $0xc] sm:$0xf]
        %v602 = vld [vmem:[%s7 + $0x10] sm:$0xf]
        %v603 = vld [vmem:[%s7 + $0x14] sm:$0xf]
        %v604 = vld [vmem:[%s7 + $0x18] sm:$0xf]
        %v605 = vld [vmem:[%s7 + $0x1c] sm:$0xf]
        %v606 = vld [vmem:[%s8] sm:$0x1]
        %v608 = vlaneseq
        %v609 = vshrl.u32 %v608, 7
        %v610 = vsub.s32 0, %v609
        %v611 = vrot.slane %v606, %v610
        %v621 = vunpack.c.l.b16 %v598
        %v622 = vunpack.c.l.b16 %v599
        %v623 = vunpack.c.l.b16 %v600
        %v624 = vunpack.c.l.b16 %v601
        %v625 = vunpack.c.l.b16 %v602
        %v626 = vunpack.c.l.b16 %v603
        %v627 = vunpack.c.l.b16 %v604
        %v628 = vunpack.c.l.b16 %v605
        %v629 = vpack.c.b16 %v622, %v621
        %v630 = vpack.c.b16 %v624, %v623
        %v631 = vpack.c.b16 %v626, %v625
        %v632 = vpack.c.b16 %v628, %v627
        %v638 = vsel %vm439, %v597, 0
        %640 = vmatprep.subr.bf16.mxu0 0
        %641 = vmatpush1.bf16.msra.mxu0 %v629
        %642 = vmatprep.subr.bf16.mxu0 0
        %643 = vmatpush1.bf16.msra.mxu0 %v630
        %644 = vmatprep.subr.bf16.mxu0 0
        %645 = vmatpush1.bf16.msra.mxu0 %v631
        %646 = vmatprep.subr.bf16.mxu0 0
        %647 = vmatpush1.bf16.msra.mxu0 %v632
        %648 = vmatprep.subr.bf16.mxu0 0
        %649 = vmatpush1.bf16.msra.mxu0 0
        %650 = vmatprep.subr.bf16.mxu0 0
        %651 = vmatpush1.bf16.msra.mxu0 0
        %652 = vmatprep.subr.bf16.mxu0 0
        %653 = vmatpush1.bf16.msra.mxu0 0
        %654 = vmatprep.subr.bf16.mxu0 0
        %655 = vmatpush1.bf16.msra.mxu0 0
        %656 = vmatprep.subr.bf16.mxu0 0
        %657 = vmatpush1.bf16.msra.mxu0 0
        %658 = vmatprep.subr.bf16.mxu0 0
        %659 = vmatpush1.bf16.msra.mxu0 0
        %660 = vmatprep.subr.bf16.mxu0 0
        %661 = vmatpush1.bf16.msra.mxu0 0
        %662 = vmatprep.subr.bf16.mxu0 0
        %663 = vmatpush1.bf16.msra.mxu0 0
        %664 = vmatprep.subr.bf16.mxu0 0
        %665 = vmatpush1.bf16.msra.mxu0 0
        %666 = vmatprep.subr.bf16.mxu0 0
        %667 = vmatpush1.bf16.msra.mxu0 0
        %668 = vmatprep.subr.bf16.mxu0 0
        %669 = vmatpush1.bf16.msra.mxu0 0
        %670 = vmatprep.subr.bf16.mxu0 0
        %671 = vmatpush1.bf16.msra.mxu0 0
        %672 = vmatprep.mubr.bf16.mxu0 0
        %673 = vmatmul.mubr.bf16.gmra.mrb[0].mxu0 %v638
        %v674 = vpop.f32.mrb[0].mxu0
        %v675 = vadd.f32 %v611, %v674
        %v676 = vpop.f32.mrb[0].mxu0
        %v677 = vpop.f32.mrb[0].mxu0
        %v678 = vpop.f32.mrb[0].mxu0
        %679 = vdwg.mxu0
        %680 = vst [vmem:[%s323] sm:$0xff] %v675
        %s681 = sand.u32 %s225, 1
        %s682 = scalar_lea.sflag [#allocation3], %s681
        %s683 = sand.u32 %s225, 1
        %s684 = smul.addr %s683, 8
        %s685 = scalar_lea.vmem [#allocation2], %s684
        // Predicated region
        $region57: #{tpu_custom_call.1} parent=55 // pred_check
          %p686 = pneg %p235
        $region58: #{tpu_custom_call.1} parent=55 // pred_check_branch
          %688 = sbr.rel (%p686) target = $region60
        $region59: #{tpu_custom_call.1} parent=55 // pred_region
          %s690 = ssub.s32 128, 128
          %691 = vsyncadd %s682, %s690
          %s692 = smul.addr %s23, 128
          %s693 = scalar_lea.hbm %s9, %s692
          %s695 = sshll.u32 %s685, 4
          %s696 = int_to_ptr.vmem [resolvable:$true] %s695
          %698 = dma.vmem_to_hbm [thread:$0]  %s696, 128, %s693, %s682
        $region60: #{tpu_custom_call.1} parent=55 // pred_fallthru
          _
      $region56: #{tpu_custom_call.1} parent=5 // pred_fallthru
        _
      %p699 = scmp.le.s32.totalorder 2, %s18
      // Predicated region
      $region61: #{tpu_custom_call.1} parent=5 // pred_check
        %p700 = pneg %p699
      $region62: #{tpu_custom_call.1} parent=5 // pred_check_branch
        %702 = sbr.rel (%p700) target = $region64
      $region63: #{tpu_custom_call.1} parent=5 // pred_region
        %s703 = ssub.s32 %s18, 2
        // Predicated region
        $region65: #{tpu_custom_call.1} parent=63 // pred_check
          %p704 = pneg %p241
        $region66: #{tpu_custom_call.1} parent=63 // pred_check_branch
          %706 = sbr.rel (%p704) target = $region68
        $region67: #{tpu_custom_call.1} parent=63 // pred_region
          %s707 = sand.u32 %s226, 1
          %s708 = scalar_lea.sflag [#allocation3], %s707
          %s709 = sand.u32 %s226, 1
          %s710 = smul.addr %s709, 8
          %s711 = scalar_lea.vmem [#allocation2], %s710
          %712 = dma.done %s708, 128
        $region68: #{tpu_custom_call.1} parent=63 // pred_fallthru
          _
      $region64: #{tpu_custom_call.1} parent=5 // pred_fallthru
        _
    $region6: #{tpu_custom_call.1} parent=1 // loop_footer
      %s22 = sadd.s32 1, %s18
    $region7: #{tpu_custom_call.1} parent=1 // loop_footer_branch
      %17 = sbr.rel target = $region3
    $region8: #{tpu_custom_call.1} parent=1 // loop_exit
      _
    %713 = vsyncpa [#allocation3], 1
    %s714 = scalar_lea.sflag [#allocation3], 1
    %715 = vsyncpa %s714, 1

</llo_original>
